<compile_context>
chip_gen: v5e
topology: v5e:2x2
jax: 0.10.0
libtpu: 0.0.40
codegen_flags: <defaults>
</compile_context>

<pallas_src>
import math

import jax
import jax.numpy as jnp
from jax.experimental import pallas as pl
from jax.experimental.pallas import tpu as pltpu

# Constants from the original L0 regularization code (Louizos et al.)
LIMIT_A = -0.1
LIMIT_B = 1.1


def _l0conv_kernel_single_k(lhs_ref, rhs_ref, bz_ref, o_ref):
    """Whole contraction in one tile: one MXU matmul per output tile, the
    gated bias (bias * z, gate already folded into rhs) fused in the epilogue."""
    o_ref[...] = (
        jnp.dot(lhs_ref[...], rhs_ref[...], preferred_element_type=jnp.float32)
        + bz_ref[...]
    ).astype(o_ref.dtype)


def _l0conv_kernel_multi_k(lhs_ref, rhs_ref, bz_ref, o_ref):
    """K split over the innermost ('arbitrary') grid axis: accumulate directly
    into the resident f32 output block — no scratch accumulator, no copy."""
    k = pl.program_id(2)

    @pl.when(k == 0)
    def _():
        o_ref[...] = jnp.broadcast_to(bz_ref[...], o_ref.shape)

    o_ref[...] += jnp.dot(
        lhs_ref[...], rhs_ref[...], preferred_element_type=jnp.float32
    )


def _round_up(v, m):
    return ((v + m - 1) // m) * m


def l0conv2d_forward(x, weights, bias, qz_loga, *, stride=1, padding=0, dilation=1,
                     tm=None, tn=None, tk=None):
    """Eval-mode forward of L0Conv2d (groups=1).

    x:       [N, Cin, H, W]      f32
    weights: [Cout, Cin, KH, KW] f32
    bias:    [Cout]              f32
    qz_loga: [Cout]              f32
    returns: [N, Cout, OH, OW]   f32
    """
    N, Cin, H, W = x.shape
    Cout, Cin_w, KH, KW = weights.shape
    assert Cin == Cin_w, "groups != 1 not supported in the Pallas kernel path"
    s, p, d = stride, padding, dilation
    OH = (H + 2 * p - d * (KH - 1) - 1) // s + 1
    OW = (W + 2 * p - d * (KW - 1) - 1) // s + 1

    M = N * OH * OW
    K = Cin * KH * KW

    # ---- deterministic hard-concrete gate (eval path), folded into weights ----
    # conv(x, w) * z + bias * z == conv(x, w * z) + bias * z
    pi = jax.nn.sigmoid(qz_loga.astype(jnp.float32))
    z = jnp.clip(pi * (LIMIT_B - LIMIT_A) + LIMIT_A, 0.0, 1.0)            # [Cout]
    rhs_f32 = (weights.astype(jnp.float32).transpose(2, 3, 1, 0)          # [KH,KW,Cin,Cout]
               .reshape(K, Cout) * z[None, :])
    bz = bias.astype(jnp.float32) * z                                     # [Cout]

    # ---- im2col in bf16 on NHWC (transpose the un-expanded input, not the
    #      KH*KW-expanded patch stack) --------------------------------------
    xb = x.astype(jnp.bfloat16).transpose(0, 2, 3, 1)                     # [N,H,W,Cin]
    xb = jnp.pad(xb, ((0, 0), (p, p), (p, p), (0, 0)))
    cols = []
    for kh in range(KH):
        for kw in range(KW):
            cols.append(
                xb[:, kh * d: kh * d + (OH - 1) * s + 1: s,
                       kw * d: kw * d + (OW - 1) * s + 1: s, :]           # [N,OH,OW,Cin]
            )
    # K ordering = (kh, kw, cin), matching rhs_f32 above.
    lhs = jnp.concatenate(cols, axis=-1).reshape(M, K)                    # bf16 [M,K]

    # ---- tile selection -----------------------------------------------------
    # N tile: cover all of (padded) Cout when small so the im2col lhs streams
    # from HBM exactly once (k is innermost -> lhs is re-read per N block).
    if tn is None:
        tn = min(_round_up(Cout, 128), 512)
    Np = _round_up(Cout, tn)
    # K tile: collapse the contraction into a single tile whenever it fits.
    if tk is None:
        kp_full = _round_up(K, 128)
        tk = kp_full if kp_full <= 2048 else 1024
    Kp = _round_up(K, tk)
    # M tile: large to amortize the ~0.35us per-grid-step overhead, but keep
    # >= 2 blocks on the leading 'parallel' axis so both TensorCores of a
    # megacore part (v7x) get work even when the N axis collapses to 1 block.
    if tm is None:
        tm = 512
        if _round_up(M, tm) // tm < 2:
            tm = max(128, _round_up(-(-M // 2), 128))
    Mp = _round_up(M, tm)

    lhs = jnp.pad(lhs, ((0, Mp - M), (0, Kp - K)))                        # bf16
    rhs = jnp.pad(rhs_f32.astype(jnp.bfloat16), ((0, Kp - K), (0, Np - Cout)))
    # NOTE: padded output channels carry z-folded zeros (zero rhs columns, zero
    # gated bias); their output columns are sliced off below — nothing relies
    # on them.
    bz2 = jnp.pad(bz, (0, Np - Cout)).reshape(1, Np)                      # f32

    grid_m, grid_n, grid_k = Mp // tm, Np // tn, Kp // tk

    # ---- generation-aware VMEM budget (v7x: 64 MiB/TC; v5e/v6e: 128 MiB) -----
    try:
        vmem_cap = int(getattr(pltpu.get_tpu_info(), "vmem_capacity_bytes", 0)) \
            or (64 << 20)
    except Exception:
        vmem_cap = 64 << 20
    footprint = (2 * (tm * tk + tk * tn) * 2      # double-buffered bf16 inputs
                 + 2 * tm * tn * 4                # resident f32 output (+ next buf)
                 + 2 * tn * 4)                    # gated bias row
    vmem_limit = min(int(0.9 * vmem_cap), max(32 << 20, 2 * footprint))

    cost = pl.CostEstimate(
        flops=2 * Mp * Kp * Np,
        transcendentals=0,
        bytes_accessed=(Mp * Kp * 2) * grid_n      # lhs, re-read per N block
                       + (Kp * Np * 2) * grid_m    # rhs, re-read per M block
                       + (Mp * Np * 4)             # f32 output writeback
                       + (Np * 4) * grid_m,        # gated bias
    )

    common = dict(
        out_shape=jax.ShapeDtypeStruct((Mp, Np), jnp.float32),
        compiler_params=pltpu.CompilerParams(
            dimension_semantics=(("parallel", "parallel") if grid_k == 1
                                 else ("parallel", "parallel", "arbitrary")),
            vmem_limit_bytes=vmem_limit,
        ),
        cost_estimate=cost,
    )

    if grid_k == 1:
        # Whole K in one tile: no accumulator, no pl.when, epilogue once per tile.
        out = pl.pallas_call(
            _l0conv_kernel_single_k,
            grid=(grid_m, grid_n),
            in_specs=[
                pl.BlockSpec((tm, tk), lambda i, j: (i, 0)),   # im2col patches
                pl.BlockSpec((tk, tn), lambda i, j: (0, j)),   # z-folded weights
                pl.BlockSpec((1, tn), lambda i, j: (0, j)),    # bias * z
            ],
            out_specs=pl.BlockSpec((tm, tn), lambda i, j: (i, j)),
            **common,
        )(lhs, rhs, bz2)
    else:
        # Split-K fallback for very large Cin*KH*KW; accumulate in the resident
        # f32 output block. (If profiling shows exposed lhs DMA here, add
        # pipeline_mode=pl.Buffered(3) to the lhs BlockSpec only.)
        out = pl.pallas_call(
            _l0conv_kernel_multi_k,
            grid=(grid_m, grid_n, grid_k),
            in_specs=[
                pl.BlockSpec((tm, tk), lambda i, j, k: (i, k)),
                pl.BlockSpec((tk, tn), lambda i, j, k: (k, j)),
                pl.BlockSpec((1, tn), lambda i, j, k: (0, j)),
            ],
            out_specs=pl.BlockSpec((tm, tn), lambda i, j, k: (i, j)),
            **common,
        )(lhs, rhs, bz2)

    out = out[:M, :Cout].reshape(N, OH, OW, Cout)
    return out.transpose(0, 3, 1, 2)                   # -> [N, Cout, OH, OW]


def l0conv2d_reference(x, weights, bias, qz_loga, *, stride=1, padding=0, dilation=1):
    """Pure-JAX reference: conv2d (+bias) * deterministic hard-concrete gate.

    Inputs are cast to bf16 (f32 accumulation) to match the kernel's MXU precision.
    """
    conv = jax.lax.conv_general_dilated(
        x.astype(jnp.bfloat16),
        weights.astype(jnp.bfloat16),
        window_strides=(stride, stride),
        padding=[(padding, padding), (padding, padding)],
        rhs_dilation=(dilation, dilation),
        dimension_numbers=("NCHW", "OIHW", "NCHW"),
        preferred_element_type=jnp.float32,
    )
    conv = conv + bias[None, :, None, None]
    pi = jax.nn.sigmoid(qz_loga)
    z = jnp.clip(pi * (LIMIT_B - LIMIT_A) + LIMIT_A, 0.0, 1.0)
    return conv * z[None, :, None, None]


if __name__ == "__main__":
    # Module hyperparameters (small, consistent with a conv layer)
    batch = 2
    in_channels = 4
    out_channels = 8
    H = W = 16
    kernel_size = 3
    stride = 1
    padding = 1
    dilation = 1
    droprate_init = 0.5

    key = jax.random.PRNGKey(0)
    k_x, k_w, k_q, k_x2, k_w2, k_q2, k_b2 = jax.random.split(key, 7)

    # Deterministic parameter init mirroring reset_parameters():
    #  - weights: kaiming_normal(mode='fan_in') -> std = sqrt(2 / (Cin*KH*KW))
    #  - qz_loga: normal(mean=log(1-p)-log(p), std=0.01)
    #  - bias: zeros
    fan_in = in_channels * kernel_size * kernel_size
    w_std = math.sqrt(2.0 / fan_in)
    weights = w_std * jax.random.normal(
        k_w, (out_channels, in_channels, kernel_size, kernel_size), jnp.float32)
    qz_mean = math.log(1.0 - droprate_init) - math.log(droprate_init)
    qz_loga = qz_mean + 0.01 * jax.random.normal(k_q, (out_channels,), jnp.float32)
    bias = jnp.zeros((out_channels,), jnp.float32)
    x = jax.random.normal(k_x, (batch, in_channels, H, W), jnp.float32)

    out = l0conv2d_forward(x, weights, bias, qz_loga,
                           stride=stride, padding=padding, dilation=dilation)
    out = jax.block_until_ready(out)
    ref = l0conv2d_reference(x, weights, bias, qz_loga,
                             stride=stride, padding=padding, dilation=dilation)
    assert out.shape == (batch, out_channels, H, W), out.shape
    assert jnp.allclose(out, ref, atol=2e-2, rtol=2e-2), "mismatch vs reference"

    # Second small check: force the split-K accumulate path (tk override) with a
    # non-zero bias to exercise the gated-bias init.
    cin2 = 32
    fan_in2 = cin2 * kernel_size * kernel_size
    w2 = math.sqrt(2.0 / fan_in2) * jax.random.normal(
        k_w2, (out_channels, cin2, kernel_size, kernel_size), jnp.float32)
    q2 = qz_mean + 0.01 * jax.random.normal(k_q2, (out_channels,), jnp.float32)
    b2 = 0.1 * jax.random.normal(k_b2, (out_channels,), jnp.float32)
    x2 = jax.random.normal(k_x2, (batch, cin2, H, W), jnp.float32)
    out2 = jax.block_until_ready(
        l0conv2d_forward(x2, w2, b2, q2, stride=1, padding=1, dilation=1, tk=128))
    ref2 = l0conv2d_reference(x2, w2, b2, q2, stride=1, padding=1, dilation=1)
    assert out2.shape == ref2.shape, out2.shape
    assert jnp.allclose(out2, ref2, atol=2e-2, rtol=2e-2), "mismatch vs reference (split-K)"

    print("KERNEL_OK")
</pallas_src>

<mosaic_0001>
module attributes {stable_mosaic.version = 11 : i64} {
  func.func @_l0conv_kernel_single_k(%arg0: i32, %arg1: i32, %arg2: memref<256x128xbf16, #tpu.memory_space<vmem>>, %arg3: memref<128x128xbf16, #tpu.memory_space<vmem>>, %arg4: memref<1x128xf32, #tpu.memory_space<vmem>>, %arg5: memref<256x128xf32, #tpu.memory_space<vmem>>) attributes {dimension_semantics = [#tpu.dimension_semantics<parallel>, #tpu.dimension_semantics<parallel>], iteration_bounds = array<i64: 2, 1>, scalar_prefetch = 0 : i64, scratch_operands = 0 : i64, tpu.core_type = #tpu.core_type<tc>, window_params = [{transform_indices = @transform_0, window_bounds = array<i64: 256, 128>}, {transform_indices = @transform_1, window_bounds = array<i64: 128, 128>}, {transform_indices = @transform_2, window_bounds = array<i64: 1, 128>}, {transform_indices = @transform_3, window_bounds = array<i64: 256, 128>}]} {
    %c0 = arith.constant 0 : index
    %c0_0 = arith.constant 0 : index
    %0 = vector.load %arg2[%c0, %c0_0] : memref<256x128xbf16, #tpu.memory_space<vmem>>, vector<256x128xbf16>
    %c0_1 = arith.constant 0 : index
    %c0_2 = arith.constant 0 : index
    %1 = vector.load %arg3[%c0_1, %c0_2] : memref<128x128xbf16, #tpu.memory_space<vmem>>, vector<128x128xbf16>
    %cst = arith.constant dense<0.000000e+00> : vector<256x128xf32>
    %2 = tpu.matmul %0, %1, %cst {dimension_numbers = #tpu.dot_dimension_numbers<[1], [0], [0], [1], [0, 0, 1, 1], [], []>} : vector<256x128xbf16>, vector<128x128xbf16>, vector<256x128xf32> -> vector<256x128xf32>
    %c0_3 = arith.constant 0 : index
    %c0_4 = arith.constant 0 : index
    %3 = vector.load %arg4[%c0_3, %c0_4] : memref<1x128xf32, #tpu.memory_space<vmem>>, vector<1x128xf32>
    %4 = vector.broadcast %3 : vector<1x128xf32> to vector<256x128xf32>
    %5 = arith.addf %2, %4 : vector<256x128xf32>
    %c0_5 = arith.constant 0 : index
    %c0_6 = arith.constant 0 : index
    %6 = vector.load %arg5[%c0_5, %c0_6] : memref<256x128xf32, #tpu.memory_space<vmem>>, vector<256x128xf32>
    tpu.vector_store %arg5[%c0_5, %c0_6], %5 {strides = array<i32>} : memref<256x128xf32, #tpu.memory_space<vmem>>, vector<256x128xf32>,
    return
  }
  func.func @transform_0(%arg0: i32, %arg1: i32) -> (i32, i32) {
    %c0_i32 = arith.constant 0 : i32
    %c0_i32_0 = arith.constant 0 : i32
    return %arg0, %c0_i32 : i32, i32
  }
  func.func @transform_1(%arg0: i32, %arg1: i32) -> (i32, i32) {
    %c0_i32 = arith.constant 0 : i32
    %c0_i32_0 = arith.constant 0 : i32
    return %c0_i32, %arg1 : i32, i32
  }
  func.func @transform_2(%arg0: i32, %arg1: i32) -> (i32, i32) {
    %c0_i32 = arith.constant 0 : i32
    %c0_i32_0 = arith.constant 0 : i32
    return %c0_i32, %arg1 : i32, i32
  }
  func.func @transform_3(%arg0: i32, %arg1: i32) -> (i32, i32) {
    %c0_i32 = arith.constant 0 : i32
    return %arg0, %arg1 : i32, i32
  }
}

</mosaic_0001>

<llo_original>
// kernel: tpu_custom_call.1
$region0: #{tpu_custom_call.1}
  #allocation0 [shape = 'u32[]', space=smem, size = 0x4, offset = 0x4, fixed_abs, tag = 'smem constant byte address 0x4 - core index']
  #allocation1 [shape = 'u32[72,128]{1,0:T(1,128)}', space=vmem, size = 0x9000, scoped, tag = 'internal scratch']
  %s0 = inlined_call_operand.hbm [shape: bf16[512,128], index: 0, kind: input, shape index: {}]
  %s1 = inlined_call_operand.hbm [shape: bf16[128,128], index: 1, kind: input, shape index: {}]
  %s2 = inlined_call_operand.vmem [shape: f32[1,128], index: 2, kind: input, shape index: {}]
  %s3 = inlined_call_operand.hbm [shape: f32[512,128], index: 3, kind: output, shape index: {}]
  %s4 = sld [smem:[#allocation0]]
  $region53: #{tpu_custom_call.1} parent=0
    _
  %s6 = ssub.s32 1, %s4
  %s7 = scalar_select 0, %s6, %s4
  $region1: #{tpu_custom_call.1} parent=0
    #allocation2 [shape = 'u8[131072]{0}', space=vmem, size = 0x20000, scoped, tag = 'input window, operand 0']
    #allocation3 [shape = 's32[2]{0}', space=sflag, size = 0x8, scoped, tag = 'scoped memory for tpu_custom_call.1']
    #allocation4 [shape = 's32[2]{0}', space=sflag, size = 0x8, scoped, tag = 'scoped memory for tpu_custom_call.1']
    #allocation5 [shape = 'u8[32768]{0}', space=vmem, size = 0x8000, scoped, tag = 'input window, operand 1, single buffered']
    #allocation6 [shape = 's32[1]{0}', space=sflag, size = 0x4, scoped, tag = 'scoped memory for tpu_custom_call.1']
    #allocation7 [shape = 'u8[262144]{0}', space=vmem, size = 0x40000, scoped, tag = 'output window, operand 0']
    %8 = vsyncpa [#allocation3], 0
    %s9 = scalar_lea.sflag [#allocation3], 1
    %10 = vsyncpa %s9, 0
    %11 = vsyncpa [#allocation6], 0
    %12 = vsyncpa [#allocation4], 0
    %s13 = scalar_lea.sflag [#allocation4], 1
    %14 = vsyncpa %s13, 0
    loop: start=0, step=1, limit=4
    $region2: #{tpu_custom_call.1} parent=1 // loop_pre_header
      _
    $region3: #{tpu_custom_call.1} parent=1 // loop_header
      %s16 = sphi 0, %s20
      %p17 = scmp.ge.s32.totalorder %s16, 4
      %s23 = sphi 0, %s35
      %s24 = sphi 0, %s31
      %s25 = sphi 0, %s23
      %s26 = sphi 0, %s24
      %s27 = sphi 0, %s25
      %s28 = sphi 0, %s26
      %s38 = sphi 0, %s40
      %s41 = sphi 0, %s38
      %s42 = sphi 0, %s41
      %s58 = sphi 0, %s42
      %s64 = sphi 0, %s66
      %s67 = sphi 0, %s64
      %s68 = sphi 0, %s67
      %s84 = sphi 0, %s68
      %s90 = sphi 0, %s92
      %s93 = sphi 0, %s90
      %s94 = sphi 0, %s93
      %s110 = sphi 0, %s94
      %s118 = sphi 0, %s120
      %s121 = sphi 0, %s118
      %s122 = sphi 0, %s121
      %s138 = sphi 0, %s122
    $region4: #{tpu_custom_call.1} parent=1 // loop_header_branch
      %19 = sbr.rel (%p17) target = $region8
    $region5: #{tpu_custom_call.1} parent=1 // loop_body
      %s21 = ssub.s32 %s16, 1
      %s22 = ssub.s32 %s16, 2
      %s29 = sadd.s32 1, %s24
      %p30 = scmp.ge.s32.totalorder %s29, 1
      %s31 = scalar_select %p30, 0, %s29
      %s32 = sadd.s32 1, %s23
      %s33 = scalar_select %p30, %s32, %s23
      %p34 = scmp.ge.s32.totalorder %s33, 2
      %s35 = scalar_select %p34, 0, %s33
      %s36 = ssub.s32 %s23, %s35
      %p37 = scmp.eq.s32.totalorder %s36, 0
      %s39 = sadd.s32 %s38, 1
      %s40 = scalar_select %p37, %s38, %s39
      %p43 = pneg %p37
      %p44 = scmp.eq.s32.totalorder %s16, 1
      %p45 = por %p43, %p44
      %p46 = scmp.ne.s32.totalorder %s38, %s41
      %p47 = scmp.eq.s32.totalorder %s16, 0
      %p48 = por %p46, %p47
      %p49 = scmp.ne.s32.totalorder %s38, %s41
      %p50 = scmp.eq.s32.totalorder %s21, 1
      %p51 = por %p49, %p50
      %p52 = scmp.ne.s32.totalorder %s41, %s42
      %p53 = scmp.eq.s32.totalorder %s21, 0
      %p54 = por %p52, %p53
      %p55 = scmp.ne.s32.totalorder %s41, %s42
      %p56 = scmp.eq.s32.totalorder %s22, 1
      %p57 = por %p55, %p56
      %p59 = scmp.ne.s32.totalorder %s42, %s58
      %p60 = scmp.eq.s32.totalorder %s22, 0
      %p61 = por %p59, %p60
      %s62 = ssub.s32 %s24, %s31
      %p63 = scmp.eq.s32.totalorder %s62, 0
      %s65 = sadd.s32 %s64, 1
      %s66 = scalar_select %p63, %s64, %s65
      %p69 = pneg %p63
      %p70 = scmp.eq.s32.totalorder %s16, 1
      %p71 = por %p69, %p70
      %p72 = scmp.ne.s32.totalorder %s64, %s67
      %p73 = scmp.eq.s32.totalorder %s16, 0
      %p74 = por %p72, %p73
      %p75 = scmp.ne.s32.totalorder %s64, %s67
      %p76 = scmp.eq.s32.totalorder %s21, 1
      %p77 = por %p75, %p76
      %p78 = scmp.ne.s32.totalorder %s67, %s68
      %p79 = scmp.eq.s32.totalorder %s21, 0
      %p80 = por %p78, %p79
      %p81 = scmp.ne.s32.totalorder %s67, %s68
      %p82 = scmp.eq.s32.totalorder %s22, 1
      %p83 = por %p81, %p82
      %p85 = scmp.ne.s32.totalorder %s68, %s84
      %p86 = scmp.eq.s32.totalorder %s22, 0
      %p87 = por %p85, %p86
      %s88 = ssub.s32 %s24, %s31
      %p89 = scmp.eq.s32.totalorder %s88, 0
      %s91 = sadd.s32 %s90, 1
      %s92 = scalar_select %p89, %s90, %s91
      %p95 = pneg %p89
      %p96 = scmp.eq.s32.totalorder %s16, 1
      %p97 = por %p95, %p96
      %p98 = scmp.ne.s32.totalorder %s90, %s93
      %p99 = scmp.eq.s32.totalorder %s16, 0
      %p100 = por %p98, %p99
      %p101 = scmp.ne.s32.totalorder %s90, %s93
      %p102 = scmp.eq.s32.totalorder %s21, 1
      %p103 = por %p101, %p102
      %p104 = scmp.ne.s32.totalorder %s93, %s94
      %p105 = scmp.eq.s32.totalorder %s21, 0
      %p106 = por %p104, %p105
      %p107 = scmp.ne.s32.totalorder %s93, %s94
      %p108 = scmp.eq.s32.totalorder %s22, 1
      %p109 = por %p107, %p108
      %p111 = scmp.ne.s32.totalorder %s94, %s110
      %p112 = scmp.eq.s32.totalorder %s22, 0
      %p113 = por %p111, %p112
      %s114 = ssub.s32 %s23, %s35
      %s115 = ssub.s32 %s24, %s31
      %s116 = sor.u32 %s114, %s115
      %p117 = scmp.eq.s32.totalorder %s116, 0
      %s119 = sadd.s32 %s118, 1
      %s120 = scalar_select %p117, %s118, %s119
      %p123 = pneg %p117
      %p124 = scmp.eq.s32.totalorder %s16, 1
      %p125 = por %p123, %p124
      %p126 = scmp.ne.s32.totalorder %s118, %s121
      %p127 = scmp.eq.s32.totalorder %s16, 0
      %p128 = por %p126, %p127
      %p129 = scmp.ne.s32.totalorder %s118, %s121
      %p130 = scmp.eq.s32.totalorder %s21, 1
      %p131 = por %p129, %p130
      %p132 = scmp.ne.s32.totalorder %s121, %s122
      %p133 = scmp.eq.s32.totalorder %s21, 0
      %p134 = por %p132, %p133
      %p135 = scmp.ne.s32.totalorder %s121, %s122
      %p136 = scmp.eq.s32.totalorder %s22, 1
      %p137 = por %p135, %p136
      %p139 = scmp.ne.s32.totalorder %s122, %s138
      %p140 = scmp.eq.s32.totalorder %s22, 0
      %p141 = por %p139, %p140
      %p142 = scmp.le.s32.totalorder 1, %s16
      %p143 = scmp.lt.s32.totalorder %s16, 3
      %p144 = pnand %p142, %p143
      %p145 = pneg %p144
      // Predicated region
      $region9: #{tpu_custom_call.1} parent=5 // pred_check
        _
      $region10: #{tpu_custom_call.1} parent=5 // pred_check_branch
        %147 = sbr.rel (%p144) target = $region12
      $region11: #{tpu_custom_call.1} parent=5 // pred_region
        %s148 = ssub.s32 %s16, 1
        // Predicated region
        $region13: #{tpu_custom_call.1} parent=11 // pred_check
          %p149 = pneg %p80
        $region14: #{tpu_custom_call.1} parent=11 // pred_check_branch
          %151 = sbr.rel (%p149) target = $region16
        $region15: #{tpu_custom_call.1} parent=11 // pred_region
          %153 = vsyncadd [#allocation6], 0
          %s154 = smul.addr %s26, 4
          %s155 = scalar_lea.hbm %s1, %s154
          %s156 = sshll.u32 %s155, 4
          %s157 = int_to_ptr.hbm [resolvable:$true] %s156
          %s158 = sshll.u32 [#allocation5], 4
          %s159 = int_to_ptr.vmem [resolvable:$true] %s158
          %164 = dma.hbm_to_vmem [thread:$0]  %s157, 1024, %s159, [#allocation6], 64, 64, 4
        $region16: #{tpu_custom_call.1} parent=11 // pred_fallthru
          _
        // Predicated region
        $region17: #{tpu_custom_call.1} parent=11 // pred_check
          %p165 = pneg %p106
        $region18: #{tpu_custom_call.1} parent=11 // pred_check_branch
          %167 = sbr.rel (%p165) target = $region20
        $region19: #{tpu_custom_call.1} parent=11 // pred_region
          %p168 = scmp.lt.s32.totalorder %s26, 0
          %s169 = scalar_select %p168, %s26, 0
          %s170 = scalar_lea.vmem %s2, %s169
        $region20: #{tpu_custom_call.1} parent=11 // pred_fallthru
          _
      $region12: #{tpu_custom_call.1} parent=5 // pred_fallthru
        _
      %p171 = scmp.lt.s32.totalorder %s16, 2
      // Predicated region
      $region21: #{tpu_custom_call.1} parent=5 // pred_check
        %p172 = pneg %p171
      $region22: #{tpu_custom_call.1} parent=5 // pred_check_branch
        %174 = sbr.rel (%p172) target = $region24
      $region23: #{tpu_custom_call.1} parent=5 // pred_region
        // Predicated region
        $region25: #{tpu_custom_call.1} parent=23 // pred_check
          %p175 = pneg %p48
        $region26: #{tpu_custom_call.1} parent=23 // pred_check_branch
          %177 = sbr.rel (%p175) target = $region28
        $region27: #{tpu_custom_call.1} parent=23 // pred_region
          %s178 = sand.u32 %s38, 1
          %s179 = scalar_lea.sflag [#allocation3], %s178
          %s180 = sand.u32 %s38, 1
          %s181 = smul.addr %s180, 128
          %s182 = scalar_lea.vmem [#allocation2], %s181
          %s183 = smul.u32 32, %s23
          %185 = vsyncadd %s179, 0
          %s186 = smul.addr %s183, 4
          %s187 = scalar_lea.hbm %s0, %s186
          %s188 = sshll.u32 %s187, 4
          %s189 = int_to_ptr.hbm [resolvable:$true] %s188
          %s190 = sshll.u32 %s182, 4
          %s191 = int_to_ptr.vmem [resolvable:$true] %s190
          %196 = dma.hbm_to_vmem [thread:$0]  %s189, 2048, %s191, %s179, 64, 64, 4
        $region28: #{tpu_custom_call.1} parent=23 // pred_fallthru
          _
      $region24: #{tpu_custom_call.1} parent=5 // pred_fallthru
        _
      %p197 = scmp.le.s32.totalorder 1, %s16
      %p198 = scmp.lt.s32.totalorder %s16, 3
      %p199 = pnand %p197, %p198
      %p200 = pneg %p199
      // Predicated region
      $region29: #{tpu_custom_call.1} parent=5 // pred_check
        _
      $region30: #{tpu_custom_call.1} parent=5 // pred_check_branch
        %202 = sbr.rel (%p199) target = $region32
      $region31: #{tpu_custom_call.1} parent=5 // pred_region
        %s203 = ssub.s32 %s16, 1
        %s204 = sand.u32 %s41, 1
        %s205 = scalar_lea.sflag [#allocation3], %s204
        %s206 = sand.u32 %s41, 1
        %s207 = smul.addr %s206, 128
        %s208 = scalar_lea.vmem [#allocation2], %s207
        // Predicated region
        $region33: #{tpu_custom_call.1} parent=31 // pred_check
          %p209 = pneg %p54
        $region34: #{tpu_custom_call.1} parent=31 // pred_check_branch
          %211 = sbr.rel (%p209) target = $region36
        $region35: #{tpu_custom_call.1} parent=31 // pred_region
          %213 = dma.done %s205, 2048
        $region36: #{tpu_custom_call.1} parent=31 // pred_fallthru
          _
        // Predicated region
        $region37: #{tpu_custom_call.1} parent=31 // pred_check
          %p214 = pneg %p80
        $region38: #{tpu_custom_call.1} parent=31 // pred_check_branch
          %216 = sbr.rel (%p214) target = $region40
        $region39: #{tpu_custom_call.1} parent=31 // pred_region
          %218 = dma.done [#allocation6], 1024
        $region40: #{tpu_custom_call.1} parent=31 // pred_fallthru
          _
        %s219 = sand.u32 %s41, 1
        %s220 = scalar_lea.sflag [#allocation3], %s219
        %s221 = sand.u32 %s41, 1
        %s222 = smul.addr %s221, 128
        %s223 = scalar_lea.vmem [#allocation2], %s222
        %p224 = pneg %p54
        %p225 = pneg %p51
        %p226 = pneg %p80
        %p227 = pneg %p77
        %p228 = scmp.lt.s32.totalorder %s26, 0
        %s229 = scalar_select %p228, %s26, 0
        %s230 = scalar_lea.vmem %s2, %s229
        %p231 = pneg %p106
        %p232 = pneg %p103
        %p233 = pneg %p134
        %p234 = pneg %p131
        %s235 = sand.u32 %s121, 1
        %s236 = scalar_lea.sflag [#allocation4], %s235
        %s237 = sand.u32 %s121, 1
        %s238 = smul.addr %s237, 256
        %s239 = scalar_lea.vmem [#allocation7], %s238
        %s240 = smul.u32 32, %s25
        %p241 = scmp.lt.s32.totalorder %s26, 0
        %s242 = scalar_select %p241, %s26, 0
        %s243 = scalar_lea.vmem %s2, %s242
        %s244 = smul.u32 32, %s25
        %v245 = vld [vmem:[%s208] sm:$0xf]
        %v246 = vld [vmem:[%s208 + $0x4] sm:$0xf]
        %v247 = vld [vmem:[%s208 + $0x8] sm:$0xf]
        %v248 = vld [vmem:[%s208 + $0xc] sm:$0xf]
        %v249 = vld [vmem:[%s208 + $0x10] sm:$0xf]
        %v250 = vld [vmem:[%s208 + $0x14] sm:$0xf]
        %v251 = vld [vmem:[%s208 + $0x18] sm:$0xf]
        %v252 = vld [vmem:[%s208 + $0x1c] sm:$0xf]
        %v253 = vld [vmem:[%s208 + $0x20] sm:$0xf]
        %v254 = vld [vmem:[%s208 + $0x24] sm:$0xf]
        %v255 = vld [vmem:[%s208 + $0x28] sm:$0xf]
        %v256 = vld [vmem:[%s208 + $0x2c] sm:$0xf]
        %v257 = vld [vmem:[%s208 + $0x30] sm:$0xf]
        %v258 = vld [vmem:[%s208 + $0x34] sm:$0xf]
        %v259 = vld [vmem:[%s208 + $0x38] sm:$0xf]
        %v260 = vld [vmem:[%s208 + $0x3c] sm:$0xf]
        %v261 = vld [vmem:[%s208 + $0x40] sm:$0xf]
        %v262 = vld [vmem:[%s208 + $0x44] sm:$0xf]
        %v263 = vld [vmem:[%s208 + $0x48] sm:$0xf]
        %v264 = vld [vmem:[%s208 + $0x4c] sm:$0xf]
        %v265 = vld [vmem:[%s208 + $0x50] sm:$0xf]
        %v266 = vld [vmem:[%s208 + $0x54] sm:$0xf]
        %v267 = vld [vmem:[%s208 + $0x58] sm:$0xf]
        %v268 = vld [vmem:[%s208 + $0x5c] sm:$0xf]
        %v269 = vld [vmem:[%s208 + $0x60] sm:$0xf]
        %v270 = vld [vmem:[%s208 + $0x64] sm:$0xf]
        %v271 = vld [vmem:[%s208 + $0x68] sm:$0xf]
        %v272 = vld [vmem:[%s208 + $0x6c] sm:$0xf]
        %v273 = vld [vmem:[%s208 + $0x70] sm:$0xf]
        %v274 = vld [vmem:[%s208 + $0x74] sm:$0xf]
        %v275 = vld [vmem:[%s208 + $0x78] sm:$0xf]
        %v276 = vld [vmem:[%s208 + $0x7c] sm:$0xf]
        %v277 = vld [vmem:[#allocation5] sm:$0xf]
        %v278 = vld [vmem:[#allocation5 + $0x4] sm:$0xf]
        %v279 = vld [vmem:[#allocation5 + $0x8] sm:$0xf]
        %v280 = vld [vmem:[#allocation5 + $0xc] sm:$0xf]
        %v281 = vld [vmem:[#allocation5 + $0x10] sm:$0xf]
        %v282 = vld [vmem:[#allocation5 + $0x14] sm:$0xf]
        %v283 = vld [vmem:[#allocation5 + $0x18] sm:$0xf]
        %v284 = vld [vmem:[#allocation5 + $0x1c] sm:$0xf]
        %v285 = vld [vmem:[#allocation5 + $0x20] sm:$0xf]
        %v286 = vld [vmem:[#allocation5 + $0x24] sm:$0xf]
        %v287 = vld [vmem:[#allocation5 + $0x28] sm:$0xf]
        %v288 = vld [vmem:[#allocation5 + $0x2c] sm:$0xf]
        %v289 = vld [vmem:[#allocation5 + $0x30] sm:$0xf]
        %v290 = vld [vmem:[#allocation5 + $0x34] sm:$0xf]
        %v291 = vld [vmem:[#allocation5 + $0x38] sm:$0xf]
        %v292 = vld [vmem:[#allocation5 + $0x3c] sm:$0xf]
        %v293 = vld [vmem:[%s243] sm:$0x1]
        %v295 = vperm.slane %v293, 0
        %v329 = vunpack.c.l.b16 %v245
        %v330 = vunpack.c.l.b16 %v246
        %v331 = vunpack.c.l.b16 %v247
        %v332 = vunpack.c.l.b16 %v248
        %v333 = vunpack.c.l.b16 %v249
        %v334 = vunpack.c.l.b16 %v250
        %v335 = vunpack.c.l.b16 %v251
        %v336 = vunpack.c.l.b16 %v252
        %v337 = vunpack.c.l.b16 %v253
        %v338 = vunpack.c.l.b16 %v254
        %v339 = vunpack.c.l.b16 %v255
        %v340 = vunpack.c.l.b16 %v256
        %v341 = vunpack.c.l.b16 %v257
        %v342 = vunpack.c.l.b16 %v258
        %v343 = vunpack.c.l.b16 %v259
        %v344 = vunpack.c.l.b16 %v260
        %v345 = vunpack.c.l.b16 %v261
        %v346 = vunpack.c.l.b16 %v262
        %v347 = vunpack.c.l.b16 %v263
        %v348 = vunpack.c.l.b16 %v264
        %v349 = vunpack.c.l.b16 %v265
        %v350 = vunpack.c.l.b16 %v266
        %v351 = vunpack.c.l.b16 %v267
        %v352 = vunpack.c.l.b16 %v268
        %v353 = vunpack.c.l.b16 %v269
        %v354 = vunpack.c.l.b16 %v270
        %v355 = vunpack.c.l.b16 %v271
        %v356 = vunpack.c.l.b16 %v272
        %v357 = vunpack.c.l.b16 %v273
        %v358 = vunpack.c.l.b16 %v274
        %v359 = vunpack.c.l.b16 %v275
        %v360 = vunpack.c.l.b16 %v276
        %v361 = vpack.c.b16 %v330, %v329
        %v362 = vpack.c.b16 %v332, %v331
        %v363 = vpack.c.b16 %v334, %v333
        %v364 = vpack.c.b16 %v336, %v335
        %v365 = vpack.c.b16 %v338, %v337
        %v366 = vpack.c.b16 %v340, %v339
        %v367 = vpack.c.b16 %v342, %v341
        %v368 = vpack.c.b16 %v344, %v343
        %v369 = vpack.c.b16 %v346, %v345
        %v370 = vpack.c.b16 %v348, %v347
        %v371 = vpack.c.b16 %v350, %v349
        %v372 = vpack.c.b16 %v352, %v351
        %v373 = vpack.c.b16 %v354, %v353
        %v374 = vpack.c.b16 %v356, %v355
        %v375 = vpack.c.b16 %v358, %v357
        %v376 = vpack.c.b16 %v360, %v359
        %v409 = vunpack.c.l.b16 %v277
        %v410 = vunpack.c.l.b16 %v278
        %v411 = vunpack.c.l.b16 %v279
        %v412 = vunpack.c.l.b16 %v280
        %v413 = vunpack.c.l.b16 %v281
        %v414 = vunpack.c.l.b16 %v282
        %v415 = vunpack.c.l.b16 %v283
        %v416 = vunpack.c.l.b16 %v284
        %v417 = vunpack.c.l.b16 %v285
        %v418 = vunpack.c.l.b16 %v286
        %v419 = vunpack.c.l.b16 %v287
        %v420 = vunpack.c.l.b16 %v288
        %v421 = vunpack.c.l.b16 %v289
        %v422 = vunpack.c.l.b16 %v290
        %v423 = vunpack.c.l.b16 %v291
        %v424 = vunpack.c.l.b16 %v292
        %v425 = vpack.c.b16 %v410, %v409
        %v426 = vpack.c.b16 %v412, %v411
        %v427 = vpack.c.b16 %v414, %v413
        %v428 = vpack.c.b16 %v416, %v415
        %v429 = vpack.c.b16 %v418, %v417
        %v430 = vpack.c.b16 %v420, %v419
        %v431 = vpack.c.b16 %v422, %v421
        %v432 = vpack.c.b16 %v424, %v423
        %441 = vmatpush.bf16.msra.mxu0 %v432
        %442 = vmatpush.bf16.msra.mxu0 %v431
        %443 = vmatpush.bf16.msra.mxu0 %v430
        %444 = vmatpush.bf16.msra.mxu0 %v429
        %445 = vmatpush.bf16.msra.mxu0 %v428
        %446 = vmatpush.bf16.msra.mxu0 %v427
        %447 = vmatpush.bf16.msra.mxu0 %v426
        %448 = vmatpush.bf16.msra.mxu0 %v425
        %449 = vmatmul.bf16.gmra.mxu0 %v361
        %v450 = vpop.f32.mrf.mxu0
        %v451 = vadd.f32 %v295, %v450
        %v452 = vpop.f32.mrf.mxu0
        %v453 = vadd.f32 %v295, %v452
        %454 = vmatmul.bf16.gmra.mxu0 %v362
        %v455 = vpop.f32.mrf.mxu0
        %v456 = vadd.f32 %v295, %v455
        %v457 = vpop.f32.mrf.mxu0
        %v458 = vadd.f32 %v295, %v457
        %459 = vmatmul.bf16.gmra.mxu0 %v363
        %v460 = vpop.f32.mrf.mxu0
        %v461 = vadd.f32 %v295, %v460
        %v462 = vpop.f32.mrf.mxu0
        %v463 = vadd.f32 %v295, %v462
        %464 = vmatmul.bf16.gmra.mxu0 %v364
        %v465 = vpop.f32.mrf.mxu0
        %v466 = vadd.f32 %v295, %v465
        %v467 = vpop.f32.mrf.mxu0
        %v468 = vadd.f32 %v295, %v467
        %469 = vmatmul.bf16.gmra.mxu0 %v365
        %v470 = vpop.f32.mrf.mxu0
        %v471 = vadd.f32 %v295, %v470
        %v472 = vpop.f32.mrf.mxu0
        %v473 = vadd.f32 %v295, %v472
        %474 = vmatmul.bf16.gmra.mxu0 %v366
        %v475 = vpop.f32.mrf.mxu0
        %v476 = vadd.f32 %v295, %v475
        %v477 = vpop.f32.mrf.mxu0
        %v478 = vadd.f32 %v295, %v477
        %479 = vmatmul.bf16.gmra.mxu0 %v367
        %v480 = vpop.f32.mrf.mxu0
        %v481 = vadd.f32 %v295, %v480
        %v482 = vpop.f32.mrf.mxu0
        %v483 = vadd.f32 %v295, %v482
        %484 = vmatmul.bf16.gmra.mxu0 %v368
        %v485 = vpop.f32.mrf.mxu0
        %v486 = vadd.f32 %v295, %v485
        %v487 = vpop.f32.mrf.mxu0
        %v488 = vadd.f32 %v295, %v487
        %489 = vmatmul.bf16.gmra.mxu0 %v369
        %v490 = vpop.f32.mrf.mxu0
        %v491 = vadd.f32 %v295, %v490
        %v492 = vpop.f32.mrf.mxu0
        %v493 = vadd.f32 %v295, %v492
        %494 = vmatmul.bf16.gmra.mxu0 %v370
        %v495 = vpop.f32.mrf.mxu0
        %v496 = vadd.f32 %v295, %v495
        %v497 = vpop.f32.mrf.mxu0
        %v498 = vadd.f32 %v295, %v497
        %499 = vmatmul.bf16.gmra.mxu0 %v371
        %v500 = vpop.f32.mrf.mxu0
        %v501 = vadd.f32 %v295, %v500
        %v502 = vpop.f32.mrf.mxu0
        %v503 = vadd.f32 %v295, %v502
        %504 = vmatmul.bf16.gmra.mxu0 %v372
        %v505 = vpop.f32.mrf.mxu0
        %v506 = vadd.f32 %v295, %v505
        %v507 = vpop.f32.mrf.mxu0
        %v508 = vadd.f32 %v295, %v507
        %509 = vmatmul.bf16.gmra.mxu0 %v373
        %v510 = vpop.f32.mrf.mxu0
        %v511 = vadd.f32 %v295, %v510
        %v512 = vpop.f32.mrf.mxu0
        %v513 = vadd.f32 %v295, %v512
        %514 = vmatmul.bf16.gmra.mxu0 %v374
        %v515 = vpop.f32.mrf.mxu0
        %v516 = vadd.f32 %v295, %v515
        %v517 = vpop.f32.mrf.mxu0
        %v518 = vadd.f32 %v295, %v517
        %519 = vmatmul.bf16.gmra.mxu0 %v375
        %v520 = vpop.f32.mrf.mxu0
        %v521 = vadd.f32 %v295, %v520
        %v522 = vpop.f32.mrf.mxu0
        %v523 = vadd.f32 %v295, %v522
        %524 = vmatmul.bf16.gmra.mxu0 %v376
        %v525 = vpop.f32.mrf.mxu0
        %v526 = vadd.f32 %v295, %v525
        %v527 = vpop.f32.mrf.mxu0
        %v528 = vadd.f32 %v295, %v527
        %529 = vdwg.mxu0
        %530 = vst [vmem:[%s239] sm:$0xff] %v451
        %531 = vst [vmem:[%s239 + $0x8] sm:$0xff] %v453
        %532 = vst [vmem:[%s239 + $0x10] sm:$0xff] %v456
        %533 = vst [vmem:[%s239 + $0x18] sm:$0xff] %v458
        %534 = vst [vmem:[%s239 + $0x20] sm:$0xff] %v461
        %535 = vst [vmem:[%s239 + $0x28] sm:$0xff] %v463
        %536 = vst [vmem:[%s239 + $0x30] sm:$0xff] %v466
        %537 = vst [vmem:[%s239 + $0x38] sm:$0xff] %v468
        %538 = vst [vmem:[%s239 + $0x40] sm:$0xff] %v471
        %539 = vst [vmem:[%s239 + $0x48] sm:$0xff] %v473
        %540 = vst [vmem:[%s239 + $0x50] sm:$0xff] %v476
        %541 = vst [vmem:[%s239 + $0x58] sm:$0xff] %v478
        %542 = vst [vmem:[%s239 + $0x60] sm:$0xff] %v481
        %543 = vst [vmem:[%s239 + $0x68] sm:$0xff] %v483
        %544 = vst [vmem:[%s239 + $0x70] sm:$0xff] %v486
        %545 = vst [vmem:[%s239 + $0x78] sm:$0xff] %v488
        %546 = vst [vmem:[%s239 + $0x80] sm:$0xff] %v491
        %547 = vst [vmem:[%s239 + $0x88] sm:$0xff] %v493
        %548 = vst [vmem:[%s239 + $0x90] sm:$0xff] %v496
        %549 = vst [vmem:[%s239 + $0x98] sm:$0xff] %v498
        %550 = vst [vmem:[%s239 + $0xa0] sm:$0xff] %v501
        %551 = vst [vmem:[%s239 + $0xa8] sm:$0xff] %v503
        %552 = vst [vmem:[%s239 + $0xb0] sm:$0xff] %v506
        %553 = vst [vmem:[%s239 + $0xb8] sm:$0xff] %v508
        %554 = vst [vmem:[%s239 + $0xc0] sm:$0xff] %v511
        %555 = vst [vmem:[%s239 + $0xc8] sm:$0xff] %v513
        %556 = vst [vmem:[%s239 + $0xd0] sm:$0xff] %v516
        %557 = vst [vmem:[%s239 + $0xd8] sm:$0xff] %v518
        %558 = vst [vmem:[%s239 + $0xe0] sm:$0xff] %v521
        %559 = vst [vmem:[%s239 + $0xe8] sm:$0xff] %v523
        %560 = vst [vmem:[%s239 + $0xf0] sm:$0xff] %v526
        %561 = vst [vmem:[%s239 + $0xf8] sm:$0xff] %v528
        %s562 = sand.u32 %s121, 1
        %s563 = scalar_lea.sflag [#allocation4], %s562
        %s564 = sand.u32 %s121, 1
        %s565 = smul.addr %s564, 256
        %s566 = scalar_lea.vmem [#allocation7], %s565
        // Predicated region
        $region41: #{tpu_custom_call.1} parent=31 // pred_check
          %p567 = pneg %p131
        $region42: #{tpu_custom_call.1} parent=31 // pred_check_branch
          %569 = sbr.rel (%p567) target = $region44
        $region43: #{tpu_custom_call.1} parent=31 // pred_region
          %s570 = smul.u32 32, %s25
          %572 = vsyncadd %s563, 0
          %s573 = sadd.s32 %s26, %s570
          %s574 = smul.addr %s573, 8
          %s575 = scalar_lea.hbm %s3, %s574
          %s576 = sshll.u32 %s566, 4
          %s577 = int_to_ptr.vmem [resolvable:$true] %s576
          %s578 = sshll.u32 %s575, 4
          %s579 = int_to_ptr.hbm [resolvable:$true] %s578
          %584 = dma.vmem_to_hbm [thread:$0]  %s577, 4096, %s579, %s563, 128, 128, 8
        $region44: #{tpu_custom_call.1} parent=31 // pred_fallthru
          _
      $region32: #{tpu_custom_call.1} parent=5 // pred_fallthru
        _
      %p585 = scmp.le.s32.totalorder 2, %s16
      // Predicated region
      $region45: #{tpu_custom_call.1} parent=5 // pred_check
        %p586 = pneg %p585
      $region46: #{tpu_custom_call.1} parent=5 // pred_check_branch
        %588 = sbr.rel (%p586) target = $region48
      $region47: #{tpu_custom_call.1} parent=5 // pred_region
        %s589 = ssub.s32 %s16, 2
        // Predicated region
        $region49: #{tpu_custom_call.1} parent=47 // pred_check
          %p590 = pneg %p137
        $region50: #{tpu_custom_call.1} parent=47 // pred_check_branch
          %592 = sbr.rel (%p590) target = $region52
        $region51: #{tpu_custom_call.1} parent=47 // pred_region
          %s593 = sand.u32 %s122, 1
          %s594 = scalar_lea.sflag [#allocation4], %s593
          %s595 = sand.u32 %s122, 1
          %s596 = smul.addr %s595, 256
          %s597 = scalar_lea.vmem [#allocation7], %s596
          %599 = dma.done %s594, 4096
        $region52: #{tpu_custom_call.1} parent=47 // pred_fallthru
          _
      $region48: #{tpu_custom_call.1} parent=5 // pred_fallthru
        _
    $region6: #{tpu_custom_call.1} parent=1 // loop_footer
      %s20 = sadd.s32 1, %s16
    $region7: #{tpu_custom_call.1} parent=1 // loop_footer_branch
      %15 = sbr.rel target = $region3
    $region8: #{tpu_custom_call.1} parent=1 // loop_exit
      _
    %600 = vsyncpa [#allocation3], 1
    %s601 = scalar_lea.sflag [#allocation3], 1
    %602 = vsyncpa %s601, 1
    %603 = vsyncpa [#allocation6], 1
    %604 = vsyncpa [#allocation4], 1
    %s605 = scalar_lea.sflag [#allocation4], 1
    %606 = vsyncpa %s605, 1

</llo_original>
